<compile_context>
chip_gen: v5e
topology: v5e:2x2
jax: 0.10.0
libtpu: 0.0.40
codegen_flags: <defaults>
</compile_context>

<pallas_src>
import math
import functools

import jax
import jax.numpy as jnp
from jax import lax
from jax.experimental import pallas as pl
from jax.experimental.pallas import tpu as pltpu

_LANE = 128


def _round_up(a, b):
    return (a + b - 1) // b * b


def build_pe(max_len: int, d_model: int, dtype=jnp.float32):
    """Sinusoidal table; same math as the PyTorch __init__ (buffer (max_len,1,d))."""
    position = jnp.arange(max_len, dtype=jnp.float32)[:, None]
    div_term = jnp.exp(jnp.arange(0, d_model, 2, dtype=jnp.float32)
                       * (-math.log(10000.0) / d_model))
    angles = position * div_term
    pe = jnp.zeros((max_len, d_model), jnp.float32)
    pe = pe.at[:, 0::2].set(jnp.sin(angles))
    pe = pe.at[:, 1::2].set(jnp.cos(angles))
    return pe[:, None, :].astype(dtype)            # (max_len, 1, d_model) like torch


def _pe_kernel(seed_ref, x_ref, pe_ref, o_ref, *, n_batch: int, p: float, dropout: bool):
    """x block is either (ts, B, D) [B >= sublane] or (ts, B*D) [small B].
    pe block is always (ts, D); broadcast / lane-tile happens in-kernel."""
    x = x_ref[...]
    pe = pe_ref[...].astype(x.dtype)               # (ts, D)
    if x.ndim == 3:                                 # (ts, B, D) + (ts, 1, D)
        y = x + pe[:, None, :]
    elif n_batch > 1:                               # (ts, B*D) + lane-tiled pe
        y = x + jnp.concatenate([pe] * n_batch, axis=-1)
    else:
        y = x + pe

    if dropout:
        # Counter-based PRNG: murmur3 finalizer of the global element index,
        # mixed with the runtime seed.  Independent of the tiling, identical on
        # every core, no TPU-only primitives.
        shape = y.shape
        flat = lax.broadcasted_iota(jnp.int32, shape, 0) + pl.program_id(0) * shape[0]
        for ax in range(1, len(shape)):
            flat = flat * shape[ax] + lax.broadcasted_iota(jnp.int32, shape, ax)
        h = flat.astype(jnp.uint32) + seed_ref[0].astype(jnp.uint32) * jnp.uint32(0x9E3779B9)
        h = h ^ (h >> 16)
        h = h * jnp.uint32(0x85EBCA6B)
        h = h ^ (h >> 13)
        h = h * jnp.uint32(0xC2B2AE35)
        h = h ^ (h >> 16)
        # Top 23 bits -> exact float32 uniform in [0,1); keep with prob 1-p.
        # (Float compare sidesteps any signed-vs-unsigned int compare concern.)
        u = (h >> 9).astype(jnp.int32).astype(jnp.float32) * jnp.float32(1.0 / (1 << 23))
        scale = jnp.where(u >= jnp.float32(p),
                          jnp.float32(1.0 / (1.0 - p)), jnp.float32(0.0))
        y = y * scale.astype(y.dtype)

    o_ref[...] = y.astype(o_ref.dtype)


def positional_encoding(x, pe, *, p: float = 0.1, training: bool = False, seed: int = 0):
    """x: (seq, batch, d_model); pe: (max_len, 1, d_model) or (max_len, d_model)."""
    S, B, D = x.shape
    if pe.ndim == 3:
        pe = pe[:, 0, :]                            # (max_len, d_model) table
    assert pe.shape[0] >= S and pe.shape[1] == D
    p = float(p)

    if training and p >= 1.0:                       # nn.Dropout(p=1.0) zeroes output
        return jnp.zeros_like(x)
    dropout = bool(training) and p > 0.0

    item = x.dtype.itemsize
    pe_item = pe.dtype.itemsize
    sub = max(8, 32 // item)                        # sublanes: 8 f32 / 16 bf16
    use_3d = B >= sub                               # small B -> dense (S, B*D) layout

    # ---- VMEM budget using real padded block bytes (x + out + pe per row) ----
    if use_3d:
        x_row = _round_up(B, sub) * _round_up(D, _LANE) * item
    else:
        x_row = _round_up(B * D, _LANE) * item
    pe_row = _round_up(D, _LANE) * pe_item
    per_row = 2 * x_row + pe_row
    budget_rows = max(1, (8 << 20) // per_row)      # ~8 MiB live, ~16-20 MiB dbl-buffered

    if S <= 8:
        ts = S                                      # single block == full dim
    else:
        ts = min(budget_rows, _round_up(pl.cdiv(S, 2), 8))   # >=2 grid steps
        ts = max(8, ts // 8 * 8)
    grid = (pl.cdiv(S, ts),)

    kernel = functools.partial(_pe_kernel, n_batch=B, p=p, dropout=dropout)
    seed_arr = jnp.array([seed], dtype=jnp.int32)
    params = pltpu.CompilerParams(
        dimension_semantics=("parallel",),          # seq axis splits across v7x cores
        vmem_limit_bytes=32 * 1024 * 1024)
    pe_spec = pl.BlockSpec((ts, D), lambda i, seed: (i, 0))

    if use_3d:
        x_in = x
        x_spec = pl.BlockSpec((ts, B, D), lambda i, seed: (i, 0, 0))
        out_shape = jax.ShapeDtypeStruct((S, B, D), x.dtype)
    else:
        x_in = x.reshape(S, B * D)                  # free, contiguous
        x_spec = pl.BlockSpec((ts, B * D), lambda i, seed: (i, 0))
        out_shape = jax.ShapeDtypeStruct((S, B * D), x.dtype)

    out = pl.pallas_call(
        kernel,
        out_shape=out_shape,
        grid_spec=pltpu.PrefetchScalarGridSpec(
            num_scalar_prefetch=1,                  # seed lands in SMEM
            grid=grid,
            in_specs=[x_spec, pe_spec],
            out_specs=x_spec),
        compiler_params=params,
    )(seed_arr, x_in, pe)
    return out if use_3d else out.reshape(S, B, D)


if __name__ == "__main__":
    key = jax.random.PRNGKey(0)
    k1, k2, k3 = jax.random.split(key, 3)
    max_len = 64

    # 1) module-like small config: seq=8, batch=2, d_model=32  (dense 2D path)
    S, B, D = 8, 2, 32
    x = jax.random.normal(k1, (S, B, D), jnp.float32)
    pe = build_pe(max_len, D)
    out = jax.block_until_ready(positional_encoding(x, pe, p=0.1, training=False))
    assert out.shape == (S, B, D)
    assert jnp.allclose(out, x + pe[:S], atol=1e-6), "eval mismatch (2D path, d_model=32)"

    # 2) lane-aligned d_model, still small batch (dense 2D path, 256 lanes)
    S, B, D = 8, 2, 128
    x2 = jax.random.normal(k2, (S, B, D), jnp.float32)
    pe2 = build_pe(max_len, D)
    out2 = jax.block_until_ready(positional_encoding(x2, pe2, p=0.1, training=False))
    assert jnp.allclose(out2, x2 + pe2[:S], atol=1e-6), "eval mismatch (2D path, d_model=128)"

    # 3) batch >= 8 exercises the 3D path and a 2-step pipelined grid
    S, B, D = 16, 8, 128
    x3 = jax.random.normal(k3, (S, B, D), jnp.float32)
    pe3 = build_pe(max_len, D)
    out3 = jax.block_until_ready(positional_encoding(x3, pe3, p=0.1, training=False))
    assert jnp.allclose(out3, x3 + pe3[:S], atol=1e-6), "eval mismatch (3D path)"

    # 4) training-mode dropout: every element is 0 or ref/(1-p), keep-rate ~ 1-p
    # TODO(synk): dropout uses a counter-based hash PRNG, so it cannot
    # bitwise-match torch's RNG stream; only the dropout semantics match.
    p_drop = 0.5
    outd = jax.block_until_ready(
        positional_encoding(x2, pe2, p=p_drop, training=True, seed=123))
    scaled = (x2 + pe2[:8]) / (1.0 - p_drop)
    ok = jnp.isclose(outd, 0.0, atol=1e-6) | jnp.isclose(outd, scaled, rtol=1e-5, atol=1e-6)
    assert bool(jnp.all(ok)), "dropout values are not in {0, x/(1-p)}"
    keep_rate = float(jnp.mean((jnp.abs(outd) > 1e-6).astype(jnp.float32)))
    assert 0.25 < keep_rate < 0.75, f"dropout keep rate {keep_rate} far from {1 - p_drop}"

    print("KERNEL_OK")
</pallas_src>

<mosaic_0001>
module attributes {stable_mosaic.version = 11 : i64} {
  func.func @_pe_kernel(%arg0: i32, %arg1: memref<1xi32, #tpu.memory_space<smem>>, %arg2: memref<8x64xf32, #tpu.memory_space<vmem>>, %arg3: memref<8x32xf32, #tpu.memory_space<vmem>>, %arg4: memref<8x64xf32, #tpu.memory_space<vmem>>) attributes {dimension_semantics = [#tpu.dimension_semantics<parallel>], iteration_bounds = array<i64: 1>, scalar_prefetch = 1 : i64, scratch_operands = 0 : i64, tpu.core_type = #tpu.core_type<tc>, window_params = [{transform_indices = @transform_0, window_bounds = array<i64: 8, 64>}, {transform_indices = @transform_1, window_bounds = array<i64: 8, 32>}, {transform_indices = @transform_2, window_bounds = array<i64: 8, 64>}]} {
    %c0 = arith.constant 0 : index
    %c0_0 = arith.constant 0 : index
    %0 = vector.load %arg2[%c0, %c0_0] : memref<8x64xf32, #tpu.memory_space<vmem>>, vector<8x64xf32>
    %c0_1 = arith.constant 0 : index
    %c0_2 = arith.constant 0 : index
    %1 = vector.load %arg3[%c0_1, %c0_2] : memref<8x32xf32, #tpu.memory_space<vmem>>, vector<8x32xf32>
    %2 = tpu.concatenate %1, %1 in 1 : vector<8x32xf32>, vector<8x32xf32> -> vector<8x64xf32>
    %3 = arith.addf %0, %2 : vector<8x64xf32>
    %c0_3 = arith.constant 0 : index
    %c0_4 = arith.constant 0 : index
    %4 = vector.load %arg4[%c0_3, %c0_4] : memref<8x64xf32, #tpu.memory_space<vmem>>, vector<8x64xf32>
    tpu.vector_store %arg4[%c0_3, %c0_4], %3 {strides = array<i32>} : memref<8x64xf32, #tpu.memory_space<vmem>>, vector<8x64xf32>,
    return
  }
  func.func @transform_0(%arg0: i32, %arg1: memref<1xi32, #tpu.memory_space<smem>>) -> (i32, i32) {
    %c0_i32 = arith.constant 0 : i32
    %c0_i32_0 = arith.constant 0 : i32
    return %arg0, %c0_i32 : i32, i32
  }
  func.func @transform_1(%arg0: i32, %arg1: memref<1xi32, #tpu.memory_space<smem>>) -> (i32, i32) {
    %c0_i32 = arith.constant 0 : i32
    %c0_i32_0 = arith.constant 0 : i32
    return %arg0, %c0_i32 : i32, i32
  }
  func.func @transform_2(%arg0: i32, %arg1: memref<1xi32, #tpu.memory_space<smem>>) -> (i32, i32) {
    %c0_i32 = arith.constant 0 : i32
    %c0_i32_0 = arith.constant 0 : i32
    return %arg0, %c0_i32 : i32, i32
  }
}

</mosaic_0001>

<llo_original>
// kernel: tpu_custom_call.1
$region0: #{tpu_custom_call.1}
  #allocation0 [shape = 'u32[]', space=smem, size = 0x4, offset = 0x4, fixed_abs, tag = 'smem constant byte address 0x4 - core index']
  #allocation1 [shape = 'u32[72,128]{1,0:T(1,128)}', space=vmem, size = 0x9000, scoped, tag = 'internal scratch']
  #allocation2 [shape = 's32[1]{0}', space=sflag, size = 0x4, scoped, tag = 'scoped memory for tpu_custom_call.1']
  #allocation3 [shape = 's32[1]{0:T(128)S(6)}', space=smem, size = 0x200, scoped, tag = 'prefetched SMEM operand 0']
  %s0 = inlined_call_operand.<no memory space> [shape: s32[1], index: 0, kind: input, shape index: {}]
  %s1 = inlined_call_operand.vmem [shape: f32[8,64], index: 1, kind: input, shape index: {}]
  %s2 = inlined_call_operand.vmem [shape: f32[64,32], index: 2, kind: input, shape index: {}]
  %s3 = inlined_call_operand.hbm [shape: f32[8,64], index: 3, kind: output, shape index: {}]
  %s4 = sld [smem:[#allocation0]]
  $region18: #{tpu_custom_call.1} parent=0
    _
  %s6 = ssub.s32 1, %s4
  %s7 = scalar_select 0, %s6, %s4
  %8 = sst [smem:[#allocation3]] %s0
  $region1: #{tpu_custom_call.1} parent=0
    #allocation4 [shape = 'u8[4096]{0}', space=vmem, size = 0x1000, scoped, tag = 'output window, operand 0, single buffered']
    #allocation5 [shape = 's32[1]{0}', space=sflag, size = 0x4, scoped, tag = 'scoped memory for tpu_custom_call.1']
    %9 = vsyncpa [#allocation5], 0
    // Predicated region
    $region2: #{tpu_custom_call.1} parent=1 // pred_check
      _
    $region3: #{tpu_custom_call.1} parent=1 // pred_check_branch
      %11 = sbr.rel (0) target = $region5
    $region4: #{tpu_custom_call.1} parent=1 // pred_region
      _
    $region5: #{tpu_custom_call.1} parent=1 // pred_fallthru
      _
    // Predicated region
    $region6: #{tpu_custom_call.1} parent=1 // pred_check
      _
    $region7: #{tpu_custom_call.1} parent=1 // pred_check_branch
      %13 = sbr.rel (0) target = $region9
    $region8: #{tpu_custom_call.1} parent=1 // pred_region
      _
    $region9: #{tpu_custom_call.1} parent=1 // pred_fallthru
      _
    %v14 = vld [vmem:[%s1] sm:$0xff]
    %v15 = vld [vmem:[%s2] sm:$0xff]
    %17 = vrot.lane.b32.xlu0 %v15, 32
    %v18 = vpop.permute.xlu0 %17
    %vm20 = vcmask 261120
    %v21 = vsel %vm20, %v15, %v18
    %v22 = vadd.f32 %v14, %v21
    %vm23 = vcmask 523264
    %24 = vst.msk [vmem:[#allocation4] sm:$0xff] %vm23, %v22
    // Predicated region
    $region10: #{tpu_custom_call.1} parent=1 // pred_check
      _
    $region11: #{tpu_custom_call.1} parent=1 // pred_check_branch
      %26 = sbr.rel (0) target = $region13
    $region12: #{tpu_custom_call.1} parent=1 // pred_region
      %28 = vsyncadd [#allocation5], 0
      %s30 = sshll.u32 [#allocation4], 4
      %s31 = int_to_ptr.vmem [resolvable:$true] %s30
      %s32 = sshll.u32 %s3, 4
      %s33 = int_to_ptr.hbm [resolvable:$true] %s32
      %35 = dma.vmem_to_hbm [thread:$0]  %s31, 128, %s33, [#allocation5]
    $region13: #{tpu_custom_call.1} parent=1 // pred_fallthru
      _
    // Predicated region
    $region14: #{tpu_custom_call.1} parent=1 // pred_check
      _
    $region15: #{tpu_custom_call.1} parent=1 // pred_check_branch
      %37 = sbr.rel (0) target = $region17
    $region16: #{tpu_custom_call.1} parent=1 // pred_region
      %39 = dma.done [#allocation5], 128
    $region17: #{tpu_custom_call.1} parent=1 // pred_fallthru
      _
    %40 = vsyncpa [#allocation5], 1

</llo_original>
